<compile_context>
chip_gen: v7x
topology: tpu7x:2x2x1
jax: 0.10.0
libtpu: 0.0.40
codegen_flags: <defaults>
</compile_context>

<pallas_src>
import functools

import numpy as np
import jax
import jax.numpy as jnp
from jax import lax
from jax.experimental import pallas as pl
from jax.experimental.pallas import tpu as pltpu


def _resblock_kernel(x_ref, w1_ref, b1_ref, a1_ref, w2_ref, b2_ref, a2_ref,
                     o_ref, *, H, W, C, d):
    # x_ref:  (1, H, W*C)        one batch element, lane-dense rows
    # w*_ref: (3, W*C, W*C)      row-band matrices, one per vertical tap ky
    # b*_ref, a*_ref: (1, W*C)   bias / PReLU slope, tiled across W (b[w*C+c] = b[c])
    # o_ref:  (1, H, W*C)
    f32 = jnp.float32
    WC = W * C

    x = x_ref[0].astype(f32)                         # (H, WC)
    zrow = jnp.zeros((d, WC), f32)

    def row_slabs(v):
        # Inputs for the 3 vertical taps of the dilated 3x3: rows h-d, h, h+d
        # (out-of-range rows are the conv's zero padding).
        up = jnp.concatenate([zrow, v[:H - d, :]], axis=0)      # row h - d
        down = jnp.concatenate([v[d:, :], zrow], axis=0)        # row h + d
        return up, v, down

    def band_conv(v, w_ref, init):
        # 3x3 dilated conv as 3 lane-dense matmuls; horizontal taps + W-edge zero
        # padding are already folded into the band matrices.
        s0, s1, s2 = row_slabs(v)
        acc = init + jnp.dot(s0, w_ref[0], preferred_element_type=f32)
        acc = acc + jnp.dot(s1, w_ref[1], preferred_element_type=f32)
        acc = acc + jnp.dot(s2, w_ref[2], preferred_element_type=f32)
        return acc

    # ---- conv1 (+ bias folded into init) + PReLU ----
    acc1 = band_conv(x, w1_ref, b1_ref[...])
    mid = jnp.where(acc1 >= 0, acc1, acc1 * a1_ref[...])

    # ---- conv2 with residual + bias folded into the accumulator init ----
    acc2 = band_conv(mid, w2_ref, x + b2_ref[...])

    # ---- final PReLU, lane-dense store ----
    out = jnp.where(acc2 >= 0, acc2, acc2 * a2_ref[...])
    o_ref[0] = out.astype(o_ref.dtype)


def _band_weights(w_oihw, W, d):
    """PyTorch conv weight (Cout, Cin, 3, 3) -> (3, W*C, W*C) row-band matrices.

    band[ky, win*C + ci, wout*C + co] = w[co, ci, ky, kx] if win == wout + (kx-1)*d
    for some kx in {0,1,2}, else 0.  Out-of-range horizontal taps are simply absent,
    which is exactly the conv's zero padding.
    """
    C = w_oihw.shape[0]
    w9 = jnp.transpose(w_oihw, (2, 3, 1, 0))                   # (ky, kx, ci, co)
    win = np.arange(W)[:, None]
    wout = np.arange(W)[None, :]
    mask = np.stack([(win == wout + (kx - 1) * d) for kx in range(3)], axis=0)
    mask = jnp.asarray(mask.astype(np.float32))                # (kx, win, wout)
    band = jnp.einsum('xio,yxcd->yicod', mask, w9)             # (ky, win, ci, wout, co)
    return band.reshape(3, W * C, W * C)


def resblock_pallas(x_nchw, params, dilation=1):
    """x_nchw: (N, C, H, W) float32. Returns (N, C, H, W)."""
    N, C, H, W = x_nchw.shape
    d = dilation
    assert d < H and d < W, "dilation must be smaller than the spatial extent"
    WC = W * C

    # NCHW -> lane-dense (N, H, W*C) rows (boundary glue only).
    x_rows = jnp.transpose(x_nchw, (0, 2, 3, 1)).reshape(N, H, WC)

    w1 = _band_weights(params["w1"], W, d)
    w2 = _band_weights(params["w2"], W, d)
    b1 = jnp.tile(params["b1"], W).reshape(1, WC)
    b2 = jnp.tile(params["b2"], W).reshape(1, WC)
    a1 = jnp.tile(params["a1"], W).reshape(1, WC)
    a2 = jnp.tile(params["a2"], W).reshape(1, WC)

    kernel = functools.partial(_resblock_kernel, H=H, W=W, C=C, d=d)

    # Advisory cost for XLA scheduling around the kernel (banded-matmul flops).
    flops = int(N) * 2 * 3 * 2 * H * WC * WC
    bytes_accessed = int(2 * N * H * WC * 4 + (6 * WC * WC + 4 * WC) * 4)
    cost = pl.CostEstimate(flops=flops, transcendentals=0,
                           bytes_accessed=bytes_accessed)

    out_rows = pl.pallas_call(
        kernel,
        out_shape=jax.ShapeDtypeStruct((N, H, WC), x_rows.dtype),
        grid_spec=pltpu.PrefetchScalarGridSpec(
            num_scalar_prefetch=0,
            grid=(N,),
            in_specs=[
                pl.BlockSpec((1, H, WC), lambda n: (n, 0, 0)),     # x rows
                pl.BlockSpec((3, WC, WC), lambda n: (0, 0, 0)),    # w1 bands
                pl.BlockSpec((1, WC), lambda n: (0, 0)),           # b1
                pl.BlockSpec((1, WC), lambda n: (0, 0)),           # a1 (PReLU of conv1)
                pl.BlockSpec((3, WC, WC), lambda n: (0, 0, 0)),    # w2 bands
                pl.BlockSpec((1, WC), lambda n: (0, 0)),           # b2
                pl.BlockSpec((1, WC), lambda n: (0, 0)),           # a2 (final PReLU)
            ],
            out_specs=pl.BlockSpec((1, H, WC), lambda n: (n, 0, 0)),
        ),
        compiler_params=pltpu.CompilerParams(
            # each n writes a disjoint output block -> truly parallel (megacore on v7x)
            dimension_semantics=("parallel",)),
        cost_estimate=cost,
    )(x_rows, w1, b1, a1, w2, b2, a2)

    # lane-dense rows -> NCHW (glue)
    return jnp.transpose(out_rows.reshape(N, H, W, C), (0, 3, 1, 2))


def resblock_ref(x, params, dilation=1):
    """Pure-JAX reference (NCHW), mirrors the PyTorch module."""
    d = dilation

    def conv(inp, w, b):
        y = lax.conv_general_dilated(
            inp, w, window_strides=(1, 1), padding=[(d, d), (d, d)],
            rhs_dilation=(d, d),
            dimension_numbers=("NCHW", "OIHW", "NCHW"))
        return y + b[None, :, None, None]

    def prelu(y, a):
        a = a[None, :, None, None]
        return jnp.where(y >= 0, y, y * a)

    out = prelu(conv(x, params["w1"], params["b1"]), params["a1"])
    out = conv(out, params["w2"], params["b2"])
    return prelu(x + out, params["a2"])


def make_params(key, channels):
    ks = jax.random.split(key, 6)
    scale = 0.1
    return {
        "w1": scale * jax.random.normal(ks[0], (channels, channels, 3, 3), jnp.float32),
        "b1": scale * jax.random.normal(ks[1], (channels,), jnp.float32),
        "a1": jnp.full((channels,), 0.25, jnp.float32),   # PyTorch PReLU default init
        "w2": scale * jax.random.normal(ks[2], (channels, channels, 3, 3), jnp.float32),
        "b2": scale * jax.random.normal(ks[3], (channels,), jnp.float32),
        "a2": jnp.full((channels,), 0.25, jnp.float32),
    }


if __name__ == "__main__":
    key = jax.random.PRNGKey(0)
    k_x, k_p = jax.random.split(key)

    N, C, H, W = 2, 8, 16, 16          # W*C == 128 -> fully lane-dense layout
    x = jax.random.normal(k_x, (N, C, H, W), jnp.float32)
    params = make_params(k_p, C)

    for dil in (1, 2):                  # exercise both plain and dilated convs
        out = jax.block_until_ready(resblock_pallas(x, params, dilation=dil))
        ref = resblock_ref(x, params, dilation=dil)
        assert out.shape == ref.shape == (N, C, H, W)
        err = float(jnp.max(jnp.abs(out - ref)))
        assert err < 1e-4, (dil, err)

    print("KERNEL_OK")
</pallas_src>

<mosaic_0001>
module attributes {stable_mosaic.version = 11 : i64} {
  func.func @_resblock_kernel(%arg0: i32, %arg1: memref<1x16x128xf32, #tpu.memory_space<vmem>>, %arg2: memref<3x128x128xf32, #tpu.memory_space<vmem>>, %arg3: memref<1x128xf32, #tpu.memory_space<vmem>>, %arg4: memref<1x128xf32, #tpu.memory_space<vmem>>, %arg5: memref<3x128x128xf32, #tpu.memory_space<vmem>>, %arg6: memref<1x128xf32, #tpu.memory_space<vmem>>, %arg7: memref<1x128xf32, #tpu.memory_space<vmem>>, %arg8: memref<1x16x128xf32, #tpu.memory_space<vmem>>) attributes {dimension_semantics = [#tpu.dimension_semantics<parallel>], iteration_bounds = array<i64: 2>, scalar_prefetch = 0 : i64, scratch_operands = 0 : i64, tpu.core_type = #tpu.core_type<tc>, window_params = [{transform_indices = @transform_0, window_bounds = array<i64: 1, 16, 128>}, {pipeline_mode = #tpu.pipeline_mode<synchronous>, transform_indices = @transform_1, window_bounds = array<i64: 3, 128, 128>}, {pipeline_mode = #tpu.pipeline_mode<synchronous>, transform_indices = @transform_2, window_bounds = array<i64: 1, 128>}, {pipeline_mode = #tpu.pipeline_mode<synchronous>, transform_indices = @transform_3, window_bounds = array<i64: 1, 128>}, {pipeline_mode = #tpu.pipeline_mode<synchronous>, transform_indices = @transform_4, window_bounds = array<i64: 3, 128, 128>}, {pipeline_mode = #tpu.pipeline_mode<synchronous>, transform_indices = @transform_5, window_bounds = array<i64: 1, 128>}, {pipeline_mode = #tpu.pipeline_mode<synchronous>, transform_indices = @transform_6, window_bounds = array<i64: 1, 128>}, {transform_indices = @transform_7, window_bounds = array<i64: 1, 16, 128>}]} {
    %c0 = arith.constant 0 : index
    %c0_0 = arith.constant 0 : index
    %c0_1 = arith.constant 0 : index
    %0 = vector.load %arg1[%c0, %c0_0, %c0_1] : memref<1x16x128xf32, #tpu.memory_space<vmem>>, vector<1x16x128xf32>
    %1 = vector.shape_cast %0 : vector<1x16x128xf32> to vector<16x128xf32>
    %cst = arith.constant 0.000000e+00 : f32
    %2 = vector.broadcast %cst : f32 to vector<1x128xf32>
    %c0_2 = arith.constant 0 : index
    %c0_3 = arith.constant 0 : index
    %3 = vector.load %arg3[%c0_2, %c0_3] : memref<1x128xf32, #tpu.memory_space<vmem>>, vector<1x128xf32>
    %4 = vector.extract_strided_slice %1 {offsets = [0, 0], sizes = [15, 128], strides = [1, 1]} : vector<16x128xf32> to vector<15x128xf32>
    %5 = tpu.concatenate %2, %4 in 0 : vector<1x128xf32>, vector<15x128xf32> -> vector<16x128xf32>
    %6 = vector.extract_strided_slice %1 {offsets = [1, 0], sizes = [15, 128], strides = [1, 1]} : vector<16x128xf32> to vector<15x128xf32>
    %7 = tpu.concatenate %6, %2 in 0 : vector<15x128xf32>, vector<1x128xf32> -> vector<16x128xf32>
    %c0_4 = arith.constant 0 : index
    %c0_5 = arith.constant 0 : index
    %c0_6 = arith.constant 0 : index
    %8 = vector.load %arg2[%c0_4, %c0_5, %c0_6] : memref<3x128x128xf32, #tpu.memory_space<vmem>>, vector<1x128x128xf32>
    %9 = vector.shape_cast %8 : vector<1x128x128xf32> to vector<128x128xf32>
    %cst_7 = arith.constant dense<0.000000e+00> : vector<16x128xf32>
    %10 = tpu.matmul %5, %9, %cst_7 {dimension_numbers = #tpu.dot_dimension_numbers<[1], [0], [0], [1], [0, 0, 1, 1], [], []>} : vector<16x128xf32>, vector<128x128xf32>, vector<16x128xf32> -> vector<16x128xf32>
    %11 = vector.broadcast %3 : vector<1x128xf32> to vector<16x128xf32>
    %12 = arith.addf %11, %10 : vector<16x128xf32>
    %c1 = arith.constant 1 : index
    %c0_8 = arith.constant 0 : index
    %c0_9 = arith.constant 0 : index
    %13 = vector.load %arg2[%c1, %c0_8, %c0_9] : memref<3x128x128xf32, #tpu.memory_space<vmem>>, vector<1x128x128xf32>
    %14 = vector.shape_cast %13 : vector<1x128x128xf32> to vector<128x128xf32>
    %cst_10 = arith.constant dense<0.000000e+00> : vector<16x128xf32>
    %15 = tpu.matmul %1, %14, %cst_10 {dimension_numbers = #tpu.dot_dimension_numbers<[1], [0], [0], [1], [0, 0, 1, 1], [], []>} : vector<16x128xf32>, vector<128x128xf32>, vector<16x128xf32> -> vector<16x128xf32>
    %16 = arith.addf %12, %15 : vector<16x128xf32>
    %c2 = arith.constant 2 : index
    %c0_11 = arith.constant 0 : index
    %c0_12 = arith.constant 0 : index
    %17 = vector.load %arg2[%c2, %c0_11, %c0_12] : memref<3x128x128xf32, #tpu.memory_space<vmem>>, vector<1x128x128xf32>
    %18 = vector.shape_cast %17 : vector<1x128x128xf32> to vector<128x128xf32>
    %cst_13 = arith.constant dense<0.000000e+00> : vector<16x128xf32>
    %19 = tpu.matmul %7, %18, %cst_13 {dimension_numbers = #tpu.dot_dimension_numbers<[1], [0], [0], [1], [0, 0, 1, 1], [], []>} : vector<16x128xf32>, vector<128x128xf32>, vector<16x128xf32> -> vector<16x128xf32>
    %20 = arith.addf %16, %19 : vector<16x128xf32>
    %cst_14 = arith.constant 0.000000e+00 : f32
    %21 = vector.broadcast %cst_14 : f32 to vector<16x128xf32>
    %22 = arith.cmpf oge, %20, %21 : vector<16x128xf32>
    %c0_15 = arith.constant 0 : index
    %c0_16 = arith.constant 0 : index
    %23 = vector.load %arg4[%c0_15, %c0_16] : memref<1x128xf32, #tpu.memory_space<vmem>>, vector<1x128xf32>
    %24 = vector.broadcast %23 : vector<1x128xf32> to vector<16x128xf32>
    %25 = arith.mulf %20, %24 : vector<16x128xf32>
    %26 = arith.select %22, %20, %25 : vector<16x128xi1>, vector<16x128xf32>
    %c0_17 = arith.constant 0 : index
    %c0_18 = arith.constant 0 : index
    %27 = vector.load %arg6[%c0_17, %c0_18] : memref<1x128xf32, #tpu.memory_space<vmem>>, vector<1x128xf32>
    %28 = vector.broadcast %27 : vector<1x128xf32> to vector<16x128xf32>
    %29 = arith.addf %1, %28 : vector<16x128xf32>
    %30 = vector.extract_strided_slice %26 {offsets = [0, 0], sizes = [15, 128], strides = [1, 1]} : vector<16x128xf32> to vector<15x128xf32>
    %31 = tpu.concatenate %2, %30 in 0 : vector<1x128xf32>, vector<15x128xf32> -> vector<16x128xf32>
    %32 = vector.extract_strided_slice %26 {offsets = [1, 0], sizes = [15, 128], strides = [1, 1]} : vector<16x128xf32> to vector<15x128xf32>
    %33 = tpu.concatenate %32, %2 in 0 : vector<15x128xf32>, vector<1x128xf32> -> vector<16x128xf32>
    %c0_19 = arith.constant 0 : index
    %c0_20 = arith.constant 0 : index
    %c0_21 = arith.constant 0 : index
    %34 = vector.load %arg5[%c0_19, %c0_20, %c0_21] : memref<3x128x128xf32, #tpu.memory_space<vmem>>, vector<1x128x128xf32>
    %35 = vector.shape_cast %34 : vector<1x128x128xf32> to vector<128x128xf32>
    %cst_22 = arith.constant dense<0.000000e+00> : vector<16x128xf32>
    %36 = tpu.matmul %31, %35, %cst_22 {dimension_numbers = #tpu.dot_dimension_numbers<[1], [0], [0], [1], [0, 0, 1, 1], [], []>} : vector<16x128xf32>, vector<128x128xf32>, vector<16x128xf32> -> vector<16x128xf32>
    %37 = arith.addf %29, %36 : vector<16x128xf32>
    %c1_23 = arith.constant 1 : index
    %c0_24 = arith.constant 0 : index
    %c0_25 = arith.constant 0 : index
    %38 = vector.load %arg5[%c1_23, %c0_24, %c0_25] : memref<3x128x128xf32, #tpu.memory_space<vmem>>, vector<1x128x128xf32>
    %39 = vector.shape_cast %38 : vector<1x128x128xf32> to vector<128x128xf32>
    %cst_26 = arith.constant dense<0.000000e+00> : vector<16x128xf32>
    %40 = tpu.matmul %26, %39, %cst_26 {dimension_numbers = #tpu.dot_dimension_numbers<[1], [0], [0], [1], [0, 0, 1, 1], [], []>} : vector<16x128xf32>, vector<128x128xf32>, vector<16x128xf32> -> vector<16x128xf32>
    %41 = arith.addf %37, %40 : vector<16x128xf32>
    %c2_27 = arith.constant 2 : index
    %c0_28 = arith.constant 0 : index
    %c0_29 = arith.constant 0 : index
    %42 = vector.load %arg5[%c2_27, %c0_28, %c0_29] : memref<3x128x128xf32, #tpu.memory_space<vmem>>, vector<1x128x128xf32>
    %43 = vector.shape_cast %42 : vector<1x128x128xf32> to vector<128x128xf32>
    %cst_30 = arith.constant dense<0.000000e+00> : vector<16x128xf32>
    %44 = tpu.matmul %33, %43, %cst_30 {dimension_numbers = #tpu.dot_dimension_numbers<[1], [0], [0], [1], [0, 0, 1, 1], [], []>} : vector<16x128xf32>, vector<128x128xf32>, vector<16x128xf32> -> vector<16x128xf32>
    %45 = arith.addf %41, %44 : vector<16x128xf32>
    %cst_31 = arith.constant 0.000000e+00 : f32
    %46 = vector.broadcast %cst_31 : f32 to vector<16x128xf32>
    %47 = arith.cmpf oge, %45, %46 : vector<16x128xf32>
    %c0_32 = arith.constant 0 : index
    %c0_33 = arith.constant 0 : index
    %48 = vector.load %arg7[%c0_32, %c0_33] : memref<1x128xf32, #tpu.memory_space<vmem>>, vector<1x128xf32>
    %49 = vector.broadcast %48 : vector<1x128xf32> to vector<16x128xf32>
    %50 = arith.mulf %45, %49 : vector<16x128xf32>
    %51 = arith.select %47, %45, %50 : vector<16x128xi1>, vector<16x128xf32>
    %c0_34 = arith.constant 0 : index
    %c0_35 = arith.constant 0 : index
    %c0_36 = arith.constant 0 : index
    %52 = vector.load %arg8[%c0_34, %c0_35, %c0_36] : memref<1x16x128xf32, #tpu.memory_space<vmem>>, vector<1x16x128xf32>
    %53 = vector.shape_cast %52 : vector<1x16x128xf32> to vector<16x128xf32>
    %54 = vector.shape_cast %51 : vector<16x128xf32> to vector<1x16x128xf32>
    tpu.vector_store %arg8[%c0_34, %c0_35, %c0_36], %54 {strides = array<i32>} : memref<1x16x128xf32, #tpu.memory_space<vmem>>, vector<1x16x128xf32>,
    return
  }
  func.func @transform_0(%arg0: i32) -> (i32, i32, i32) {
    %c0_i32 = arith.constant 0 : i32
    %c0_i32_0 = arith.constant 0 : i32
    %c0_i32_1 = arith.constant 0 : i32
    return %arg0, %c0_i32, %c0_i32_0 : i32, i32, i32
  }
  func.func @transform_1(%arg0: i32) -> (i32, i32, i32) {
    %c0_i32 = arith.constant 0 : i32
    %c0_i32_0 = arith.constant 0 : i32
    %c0_i32_1 = arith.constant 0 : i32
    %c0_i32_2 = arith.constant 0 : i32
    return %c0_i32, %c0_i32_0, %c0_i32_1 : i32, i32, i32
  }
  func.func @transform_2(%arg0: i32) -> (i32, i32) {
    %c0_i32 = arith.constant 0 : i32
    %c0_i32_0 = arith.constant 0 : i32
    %c0_i32_1 = arith.constant 0 : i32
    return %c0_i32, %c0_i32_0 : i32, i32
  }
  func.func @transform_3(%arg0: i32) -> (i32, i32) {
    %c0_i32 = arith.constant 0 : i32
    %c0_i32_0 = arith.constant 0 : i32
    %c0_i32_1 = arith.constant 0 : i32
    return %c0_i32, %c0_i32_0 : i32, i32
  }
  func.func @transform_4(%arg0: i32) -> (i32, i32, i32) {
    %c0_i32 = arith.constant 0 : i32
    %c0_i32_0 = arith.constant 0 : i32
    %c0_i32_1 = arith.constant 0 : i32
    %c0_i32_2 = arith.constant 0 : i32
    return %c0_i32, %c0_i32_0, %c0_i32_1 : i32, i32, i32
  }
  func.func @transform_5(%arg0: i32) -> (i32, i32) {
    %c0_i32 = arith.constant 0 : i32
    %c0_i32_0 = arith.constant 0 : i32
    %c0_i32_1 = arith.constant 0 : i32
    return %c0_i32, %c0_i32_0 : i32, i32
  }
  func.func @transform_6(%arg0: i32) -> (i32, i32) {
    %c0_i32 = arith.constant 0 : i32
    %c0_i32_0 = arith.constant 0 : i32
    %c0_i32_1 = arith.constant 0 : i32
    return %c0_i32, %c0_i32_0 : i32, i32
  }
  func.func @transform_7(%arg0: i32) -> (i32, i32, i32) {
    %c0_i32 = arith.constant 0 : i32
    %c0_i32_0 = arith.constant 0 : i32
    %c0_i32_1 = arith.constant 0 : i32
    return %arg0, %c0_i32, %c0_i32_0 : i32, i32, i32
  }
}

</mosaic_0001>

<llo_original>
// kernel: tpu_custom_call.1
$region0: #{tpu_custom_call.1}
  #allocation0 [shape = 'u32[]', space=smem, size = 0x4, offset = 0x4, fixed_abs, tag = 'smem constant byte address 0x4 - core index']
  #allocation1 [shape = 'u32[144,128]{1,0:T(1,128)}', space=vmem, size = 0x12000, scoped, tag = 'internal scratch']
  %s0 = inlined_call_operand.hbm [shape: f32[2,16,128], index: 0, kind: input, shape index: {}]
  %s1 = inlined_call_operand.hbm [shape: f32[3,128,128], index: 1, kind: input, shape index: {}]
  %s2 = inlined_call_operand.vmem [shape: f32[1,128], index: 2, kind: input, shape index: {}]
  %s3 = inlined_call_operand.vmem [shape: f32[1,128], index: 3, kind: input, shape index: {}]
  %s4 = inlined_call_operand.hbm [shape: f32[3,128,128], index: 4, kind: input, shape index: {}]
  %s5 = inlined_call_operand.vmem [shape: f32[1,128], index: 5, kind: input, shape index: {}]
  %s6 = inlined_call_operand.vmem [shape: f32[1,128], index: 6, kind: input, shape index: {}]
  %s7 = inlined_call_operand.hbm [shape: f32[2,16,128], index: 7, kind: output, shape index: {}]
  %s8 = sld [smem:[#allocation0]]
  $region73: #{tpu_custom_call.1} parent=0
    _
  %s10 = ssub.s32 1, %s8
  %s11 = scalar_select 0, %s10, %s8
  $region1: #{tpu_custom_call.1} parent=0
    #allocation2 [shape = 'u8[16384]{0}', space=vmem, size = 0x4000, scoped, tag = 'input window, operand 0']
    #allocation3 [shape = 's32[2]{0}', space=sflag, size = 0x8, scoped, tag = 'scoped memory for tpu_custom_call.1']
    #allocation4 [shape = 's32[2]{0}', space=sflag, size = 0x8, scoped, tag = 'scoped memory for tpu_custom_call.1']
    #allocation5 [shape = 'u8[196608]{0}', space=vmem, size = 0x30000, scoped, tag = 'input window, operand 1, single buffered']
    #allocation6 [shape = 's32[1]{0}', space=sflag, size = 0x4, scoped, tag = 'scoped memory for tpu_custom_call.1']
    #allocation7 [shape = 'u8[196608]{0}', space=vmem, size = 0x30000, scoped, tag = 'input window, operand 4, single buffered']
    #allocation8 [shape = 'u8[16384]{0}', space=vmem, size = 0x4000, scoped, tag = 'output window, operand 0']
    %12 = vsyncpa [#allocation3], 0
    %s13 = scalar_lea.sflag [#allocation3], 1
    %14 = vsyncpa %s13, 0
    %15 = vsyncpa [#allocation6], 0
    %16 = vsyncpa [#allocation4], 0
    %s17 = scalar_lea.sflag [#allocation4], 1
    %18 = vsyncpa %s17, 0
    loop: start=0, step=1, limit=4
    $region2: #{tpu_custom_call.1} parent=1 // loop_pre_header
      _
    $region3: #{tpu_custom_call.1} parent=1 // loop_header
      %s20 = sphi 0, %s24
      %p21 = scmp.ge.s32.totalorder %s20, 4
      %s30 = sphi 0, %s32
      %s33 = sphi 0, %s30
      %s34 = sphi 0, %s33
      %s50 = sphi 0, %s34
      %s54 = sphi 0, %s54
      %s56 = sphi 0, %s54
      %s57 = sphi 0, %s56
      %s71 = sphi 0, %s57
      %s75 = sphi 0, %s75
      %s77 = sphi 0, %s75
      %s78 = sphi 0, %s77
      %s92 = sphi 0, %s78
      %s96 = sphi 0, %s96
      %s98 = sphi 0, %s96
      %s99 = sphi 0, %s98
      %s113 = sphi 0, %s99
      %s117 = sphi 0, %s117
      %s119 = sphi 0, %s117
      %s120 = sphi 0, %s119
      %s134 = sphi 0, %s120
      %s138 = sphi 0, %s138
      %s140 = sphi 0, %s138
      %s141 = sphi 0, %s140
      %s155 = sphi 0, %s141
      %s159 = sphi 0, %s159
      %s161 = sphi 0, %s159
      %s162 = sphi 0, %s161
      %s176 = sphi 0, %s162
      %s182 = sphi 0, %s184
      %s185 = sphi 0, %s182
      %s186 = sphi 0, %s185
      %s202 = sphi 0, %s186
    $region4: #{tpu_custom_call.1} parent=1 // loop_header_branch
      %23 = sbr.rel (%p21) target = $region8
    $region5: #{tpu_custom_call.1} parent=1 // loop_body
      %s25 = ssub.s32 %s20, 1
      %s26 = ssub.s32 %s20, 2
      %s27 = sadd.s32 %s20, 1
      %s28 = ssub.s32 %s20, %s27
      %p29 = scmp.eq.s32.totalorder %s28, 0
      %s31 = sadd.s32 %s30, 1
      %s32 = scalar_select %p29, %s30, %s31
      %p35 = pneg %p29
      %p36 = scmp.eq.s32.totalorder %s20, 1
      %p37 = por %p35, %p36
      %p38 = scmp.ne.s32.totalorder %s30, %s33
      %p39 = scmp.eq.s32.totalorder %s20, 0
      %p40 = por %p38, %p39
      %p41 = scmp.ne.s32.totalorder %s30, %s33
      %p42 = scmp.eq.s32.totalorder %s25, 1
      %p43 = por %p41, %p42
      %p44 = scmp.ne.s32.totalorder %s33, %s34
      %p45 = scmp.eq.s32.totalorder %s25, 0
      %p46 = por %p44, %p45
      %p47 = scmp.ne.s32.totalorder %s33, %s34
      %p48 = scmp.eq.s32.totalorder %s26, 1
      %p49 = por %p47, %p48
      %p51 = scmp.ne.s32.totalorder %s34, %s50
      %p52 = scmp.eq.s32.totalorder %s26, 0
      %p53 = por %p51, %p52
      %s55 = sadd.s32 %s54, 1
      %p58 = scmp.eq.s32.totalorder %s20, 1
      %p59 = scmp.ne.s32.totalorder %s54, %s56
      %p60 = scmp.eq.s32.totalorder %s20, 0
      %p61 = por %p59, %p60
      %p62 = scmp.ne.s32.totalorder %s54, %s56
      %p63 = scmp.eq.s32.totalorder %s25, 1
      %p64 = por %p62, %p63
      %p65 = scmp.ne.s32.totalorder %s56, %s57
      %p66 = scmp.eq.s32.totalorder %s25, 0
      %p67 = por %p65, %p66
      %p68 = scmp.ne.s32.totalorder %s56, %s57
      %p69 = scmp.eq.s32.totalorder %s26, 1
      %p70 = por %p68, %p69
      %p72 = scmp.ne.s32.totalorder %s57, %s71
      %p73 = scmp.eq.s32.totalorder %s26, 0
      %p74 = por %p72, %p73
      %s76 = sadd.s32 %s75, 1
      %p79 = scmp.eq.s32.totalorder %s20, 1
      %p80 = scmp.ne.s32.totalorder %s75, %s77
      %p81 = scmp.eq.s32.totalorder %s20, 0
      %p82 = por %p80, %p81
      %p83 = scmp.ne.s32.totalorder %s75, %s77
      %p84 = scmp.eq.s32.totalorder %s25, 1
      %p85 = por %p83, %p84
      %p86 = scmp.ne.s32.totalorder %s77, %s78
      %p87 = scmp.eq.s32.totalorder %s25, 0
      %p88 = por %p86, %p87
      %p89 = scmp.ne.s32.totalorder %s77, %s78
      %p90 = scmp.eq.s32.totalorder %s26, 1
      %p91 = por %p89, %p90
      %p93 = scmp.ne.s32.totalorder %s78, %s92
      %p94 = scmp.eq.s32.totalorder %s26, 0
      %p95 = por %p93, %p94
      %s97 = sadd.s32 %s96, 1
      %p100 = scmp.eq.s32.totalorder %s20, 1
      %p101 = scmp.ne.s32.totalorder %s96, %s98
      %p102 = scmp.eq.s32.totalorder %s20, 0
      %p103 = por %p101, %p102
      %p104 = scmp.ne.s32.totalorder %s96, %s98
      %p105 = scmp.eq.s32.totalorder %s25, 1
      %p106 = por %p104, %p105
      %p107 = scmp.ne.s32.totalorder %s98, %s99
      %p108 = scmp.eq.s32.totalorder %s25, 0
      %p109 = por %p107, %p108
      %p110 = scmp.ne.s32.totalorder %s98, %s99
      %p111 = scmp.eq.s32.totalorder %s26, 1
      %p112 = por %p110, %p111
      %p114 = scmp.ne.s32.totalorder %s99, %s113
      %p115 = scmp.eq.s32.totalorder %s26, 0
      %p116 = por %p114, %p115
      %s118 = sadd.s32 %s117, 1
      %p121 = scmp.eq.s32.totalorder %s20, 1
      %p122 = scmp.ne.s32.totalorder %s117, %s119
      %p123 = scmp.eq.s32.totalorder %s20, 0
      %p124 = por %p122, %p123
      %p125 = scmp.ne.s32.totalorder %s117, %s119
      %p126 = scmp.eq.s32.totalorder %s25, 1
      %p127 = por %p125, %p126
      %p128 = scmp.ne.s32.totalorder %s119, %s120
      %p129 = scmp.eq.s32.totalorder %s25, 0
      %p130 = por %p128, %p129
      %p131 = scmp.ne.s32.totalorder %s119, %s120
      %p132 = scmp.eq.s32.totalorder %s26, 1
      %p133 = por %p131, %p132
      %p135 = scmp.ne.s32.totalorder %s120, %s134
      %p136 = scmp.eq.s32.totalorder %s26, 0
      %p137 = por %p135, %p136
      %s139 = sadd.s32 %s138, 1
      %p142 = scmp.eq.s32.totalorder %s20, 1
      %p143 = scmp.ne.s32.totalorder %s138, %s140
      %p144 = scmp.eq.s32.totalorder %s20, 0
      %p145 = por %p143, %p144
      %p146 = scmp.ne.s32.totalorder %s138, %s140
      %p147 = scmp.eq.s32.totalorder %s25, 1
      %p148 = por %p146, %p147
      %p149 = scmp.ne.s32.totalorder %s140, %s141
      %p150 = scmp.eq.s32.totalorder %s25, 0
      %p151 = por %p149, %p150
      %p152 = scmp.ne.s32.totalorder %s140, %s141
      %p153 = scmp.eq.s32.totalorder %s26, 1
      %p154 = por %p152, %p153
      %p156 = scmp.ne.s32.totalorder %s141, %s155
      %p157 = scmp.eq.s32.totalorder %s26, 0
      %p158 = por %p156, %p157
      %s160 = sadd.s32 %s159, 1
      %p163 = scmp.eq.s32.totalorder %s20, 1
      %p164 = scmp.ne.s32.totalorder %s159, %s161
      %p165 = scmp.eq.s32.totalorder %s20, 0
      %p166 = por %p164, %p165
      %p167 = scmp.ne.s32.totalorder %s159, %s161
      %p168 = scmp.eq.s32.totalorder %s25, 1
      %p169 = por %p167, %p168
      %p170 = scmp.ne.s32.totalorder %s161, %s162
      %p171 = scmp.eq.s32.totalorder %s25, 0
      %p172 = por %p170, %p171
      %p173 = scmp.ne.s32.totalorder %s161, %s162
      %p174 = scmp.eq.s32.totalorder %s26, 1
      %p175 = por %p173, %p174
      %p177 = scmp.ne.s32.totalorder %s162, %s176
      %p178 = scmp.eq.s32.totalorder %s26, 0
      %p179 = por %p177, %p178
      %s180 = ssub.s32 %s20, %s27
      %p181 = scmp.eq.s32.totalorder %s180, 0
      %s183 = sadd.s32 %s182, 1
      %s184 = scalar_select %p181, %s182, %s183
      %p187 = pneg %p181
      %p188 = scmp.eq.s32.totalorder %s20, 1
      %p189 = por %p187, %p188
      %p190 = scmp.ne.s32.totalorder %s182, %s185
      %p191 = scmp.eq.s32.totalorder %s20, 0
      %p192 = por %p190, %p191
      %p193 = scmp.ne.s32.totalorder %s182, %s185
      %p194 = scmp.eq.s32.totalorder %s25, 1
      %p195 = por %p193, %p194
      %p196 = scmp.ne.s32.totalorder %s185, %s186
      %p197 = scmp.eq.s32.totalorder %s25, 0
      %p198 = por %p196, %p197
      %p199 = scmp.ne.s32.totalorder %s185, %s186
      %p200 = scmp.eq.s32.totalorder %s26, 1
      %p201 = por %p199, %p200
      %p203 = scmp.ne.s32.totalorder %s186, %s202
      %p204 = scmp.eq.s32.totalorder %s26, 0
      %p205 = por %p203, %p204
      %p206 = scmp.le.s32.totalorder 1, %s20
      %p207 = scmp.lt.s32.totalorder %s20, 3
      %p208 = pnand %p206, %p207
      %p209 = pneg %p208
      // Predicated region
      $region9: #{tpu_custom_call.1} parent=5 // pred_check
        _
      $region10: #{tpu_custom_call.1} parent=5 // pred_check_branch
        %211 = sbr.rel (%p208) target = $region12
      $region11: #{tpu_custom_call.1} parent=5 // pred_region
        %s212 = ssub.s32 %s20, 1
        // Predicated region
        $region13: #{tpu_custom_call.1} parent=11 // pred_check
          %p213 = pneg %p67
        $region14: #{tpu_custom_call.1} parent=11 // pred_check_branch
          %215 = sbr.rel (%p213) target = $region16
        $region15: #{tpu_custom_call.1} parent=11 // pred_region
          %s217 = ssub.s32 6144, 6144
          %218 = vsyncadd [#allocation6], %s217
          %s219 = sshll.u32 [#allocation5], 4
          %s220 = int_to_ptr.vmem [resolvable:$true] %s219
          %225 = dma.hbm_to_vmem [thread:$0]  %s1, 6144, %s220, [#allocation6], 128, 128, 8
        $region16: #{tpu_custom_call.1} parent=11 // pred_fallthru
          _
        // Predicated region
        $region17: #{tpu_custom_call.1} parent=11 // pred_check
          %p226 = pneg %p88
        $region18: #{tpu_custom_call.1} parent=11 // pred_check_branch
          %228 = sbr.rel (%p226) target = $region20
        $region19: #{tpu_custom_call.1} parent=11 // pred_region
          _
        $region20: #{tpu_custom_call.1} parent=11 // pred_fallthru
          _
        // Predicated region
        $region21: #{tpu_custom_call.1} parent=11 // pred_check
          %p229 = pneg %p109
        $region22: #{tpu_custom_call.1} parent=11 // pred_check_branch
          %231 = sbr.rel (%p229) target = $region24
        $region23: #{tpu_custom_call.1} parent=11 // pred_region
          _
        $region24: #{tpu_custom_call.1} parent=11 // pred_fallthru
          _
        // Predicated region
        $region25: #{tpu_custom_call.1} parent=11 // pred_check
          %p232 = pneg %p130
        $region26: #{tpu_custom_call.1} parent=11 // pred_check_branch
          %234 = sbr.rel (%p232) target = $region28
        $region27: #{tpu_custom_call.1} parent=11 // pred_region
          %s236 = ssub.s32 6144, 6144
          %237 = vsyncadd [#allocation6], %s236
          %s238 = sshll.u32 [#allocation7], 4
          %s239 = int_to_ptr.vmem [resolvable:$true] %s238
          %244 = dma.hbm_to_vmem [thread:$0]  %s4, 6144, %s239, [#allocation6], 128, 128, 8
        $region28: #{tpu_custom_call.1} parent=11 // pred_fallthru
          _
        // Predicated region
        $region29: #{tpu_custom_call.1} parent=11 // pred_check
          %p245 = pneg %p151
        $region30: #{tpu_custom_call.1} parent=11 // pred_check_branch
          %247 = sbr.rel (%p245) target = $region32
        $region31: #{tpu_custom_call.1} parent=11 // pred_region
          _
        $region32: #{tpu_custom_call.1} parent=11 // pred_fallthru
          _
        // Predicated region
        $region33: #{tpu_custom_call.1} parent=11 // pred_check
          %p248 = pneg %p172
        $region34: #{tpu_custom_call.1} parent=11 // pred_check_branch
          %250 = sbr.rel (%p248) target = $region36
        $region35: #{tpu_custom_call.1} parent=11 // pred_region
          _
        $region36: #{tpu_custom_call.1} parent=11 // pred_fallthru
          _
      $region12: #{tpu_custom_call.1} parent=5 // pred_fallthru
        _
      %p251 = scmp.lt.s32.totalorder %s20, 2
      // Predicated region
      $region37: #{tpu_custom_call.1} parent=5 // pred_check
        %p252 = pneg %p251
      $region38: #{tpu_custom_call.1} parent=5 // pred_check_branch
        %254 = sbr.rel (%p252) target = $region40
      $region39: #{tpu_custom_call.1} parent=5 // pred_region
        // Predicated region
        $region41: #{tpu_custom_call.1} parent=39 // pred_check
          %p255 = pneg %p40
        $region42: #{tpu_custom_call.1} parent=39 // pred_check_branch
          %257 = sbr.rel (%p255) target = $region44
        $region43: #{tpu_custom_call.1} parent=39 // pred_region
          %s258 = sand.u32 %s30, 1
          %s259 = scalar_lea.sflag [#allocation3], %s258
          %s260 = sand.u32 %s30, 1
          %s261 = smul.addr %s260, 16
          %s262 = scalar_lea.vmem [#allocation2], %s261
          %s264 = ssub.s32 256, 256
          %265 = vsyncadd %s259, %s264
          %s266 = smul.addr %s20, 2
          %s267 = smul.addr %s266, 128
          %s268 = scalar_lea.hbm %s0, %s267
          %s269 = sshll.u32 %s262, 4
          %s270 = int_to_ptr.vmem [resolvable:$true] %s269
          %275 = dma.hbm_to_vmem [thread:$0]  %s268, 256, %s270, %s259, 128, 128, 8
        $region44: #{tpu_custom_call.1} parent=39 // pred_fallthru
          _
      $region40: #{tpu_custom_call.1} parent=5 // pred_fallthru
        _
      %p276 = scmp.le.s32.totalorder 1, %s20
      %p277 = scmp.lt.s32.totalorder %s20, 3
      %p278 = pnand %p276, %p277
      %p279 = pneg %p278
      // Predicated region
      $region45: #{tpu_custom_call.1} parent=5 // pred_check
        _
      $region46: #{tpu_custom_call.1} parent=5 // pred_check_branch
        %281 = sbr.rel (%p278) target = $region48
      $region47: #{tpu_custom_call.1} parent=5 // pred_region
        %s282 = ssub.s32 %s20, 1
        %s283 = sand.u32 %s33, 1
        %s284 = scalar_lea.sflag [#allocation3], %s283
        %s285 = sand.u32 %s33, 1
        %s286 = smul.addr %s285, 16
        %s287 = scalar_lea.vmem [#allocation2], %s286
        // Predicated region
        $region49: #{tpu_custom_call.1} parent=47 // pred_check
          %p288 = pneg %p46
        $region50: #{tpu_custom_call.1} parent=47 // pred_check_branch
          %290 = sbr.rel (%p288) target = $region52
        $region51: #{tpu_custom_call.1} parent=47 // pred_region
          %291 = dma.done %s284, 256
        $region52: #{tpu_custom_call.1} parent=47 // pred_fallthru
          _
        // Predicated region
        $region53: #{tpu_custom_call.1} parent=47 // pred_check
          %p292 = pneg %p67
        $region54: #{tpu_custom_call.1} parent=47 // pred_check_branch
          %294 = sbr.rel (%p292) target = $region56
        $region55: #{tpu_custom_call.1} parent=47 // pred_region
          %295 = dma.done [#allocation6], 6144
        $region56: #{tpu_custom_call.1} parent=47 // pred_fallthru
          _
        // Predicated region
        $region57: #{tpu_custom_call.1} parent=47 // pred_check
          %p296 = pneg %p130
        $region58: #{tpu_custom_call.1} parent=47 // pred_check_branch
          %298 = sbr.rel (%p296) target = $region60
        $region59: #{tpu_custom_call.1} parent=47 // pred_region
          %299 = dma.done [#allocation6], 6144
        $region60: #{tpu_custom_call.1} parent=47 // pred_fallthru
          _
        %s300 = sand.u32 %s33, 1
        %s301 = scalar_lea.sflag [#allocation3], %s300
        %s302 = sand.u32 %s33, 1
        %s303 = smul.addr %s302, 16
        %s304 = scalar_lea.vmem [#allocation2], %s303
        %p305 = pneg %p46
        %p306 = pneg %p43
        %p307 = pneg %p67
        %p308 = pneg %p64
        %p309 = pneg %p88
        %p310 = pneg %p85
        %p311 = pneg %p109
        %p312 = pneg %p106
        %p313 = pneg %p130
        %p314 = pneg %p127
        %p315 = pneg %p151
        %p316 = pneg %p148
        %p317 = pneg %p172
        %p318 = pneg %p169
        %p319 = pneg %p198
        %p320 = pneg %p195
        %s321 = sand.u32 %s185, 1
        %s322 = scalar_lea.sflag [#allocation4], %s321
        %s323 = sand.u32 %s185, 1
        %s324 = smul.addr %s323, 16
        %s325 = scalar_lea.vmem [#allocation8], %s324
        %v326 = vld [vmem:[%s287] sm:$0xff]
        %v327 = vld [vmem:[%s287 + $0x8] sm:$0xff]
        %v328 = vld [vmem:[%s2] sm:$0x1]
        %vm331 = vcmask 1040384
        %v332 = vrot.slane %v326, 7
        %v333 = vrot.slane %v327, 7
        %v334 = vsel %vm331, %v332, %v333
        %v337 = vsel %vm331, 0.0, %v332
        %vm338 = vcmask 1046528
        %v339 = vrot.slane %v326, 1
        %v340 = vrot.slane %v327, 1
        %v341 = vsel %vm338, %v339, %v340
        %v344 = vsel %vm338, %v340, 0.0
        %v345 = vld [vmem:[#allocation5] sm:$0xff]
        %v346 = vld [vmem:[#allocation5 + $0x8] sm:$0xff]
        %v347 = vld [vmem:[#allocation5 + $0x10] sm:$0xff]
        %v348 = vld [vmem:[#allocation5 + $0x18] sm:$0xff]
        %v349 = vld [vmem:[#allocation5 + $0x20] sm:$0xff]
        %v350 = vld [vmem:[#allocation5 + $0x28] sm:$0xff]
        %v351 = vld [vmem:[#allocation5 + $0x30] sm:$0xff]
        %v352 = vld [vmem:[#allocation5 + $0x38] sm:$0xff]
        %v353 = vld [vmem:[#allocation5 + $0x40] sm:$0xff]
        %v354 = vld [vmem:[#allocation5 + $0x48] sm:$0xff]
        %v355 = vld [vmem:[#allocation5 + $0x50] sm:$0xff]
        %v356 = vld [vmem:[#allocation5 + $0x58] sm:$0xff]
        %v357 = vld [vmem:[#allocation5 + $0x60] sm:$0xff]
        %v358 = vld [vmem:[#allocation5 + $0x68] sm:$0xff]
        %v359 = vld [vmem:[#allocation5 + $0x70] sm:$0xff]
        %v360 = vld [vmem:[#allocation5 + $0x78] sm:$0xff]
        %361 = vmatprep.subr.mxu0 0.0
        %362 = vmatpush1.msra.mxu0 %v345
        %363 = vmatprep.subr.mxu0 0.0
        %364 = vmatpush1.msra.mxu0 %v346
        %365 = vmatprep.subr.mxu0 0.0
        %366 = vmatpush1.msra.mxu0 %v347
        %367 = vmatprep.subr.mxu0 0.0
        %368 = vmatpush1.msra.mxu0 %v348
        %369 = vmatprep.subr.mxu0 0.0
        %370 = vmatpush1.msra.mxu0 %v349
        %371 = vmatprep.subr.mxu0 0.0
        %372 = vmatpush1.msra.mxu0 %v350
        %373 = vmatprep.subr.mxu0 0.0
        %374 = vmatpush1.msra.mxu0 %v351
        %375 = vmatprep.subr.mxu0 0.0
        %376 = vmatpush1.msra.mxu0 %v352
        %377 = vmatprep.subr.mxu0 0.0
        %378 = vmatpush1.msra.mxu0 %v353
        %379 = vmatprep.subr.mxu0 0.0
        %380 = vmatpush1.msra.mxu0 %v354
        %381 = vmatprep.subr.mxu0 0.0
        %382 = vmatpush1.msra.mxu0 %v355
        %383 = vmatprep.subr.mxu0 0.0
        %384 = vmatpush1.msra.mxu0 %v356
        %385 = vmatprep.subr.mxu0 0.0
        %386 = vmatpush1.msra.mxu0 %v357
        %387 = vmatprep.subr.mxu0 0.0
        %388 = vmatpush1.msra.mxu0 %v358
        %389 = vmatprep.subr.mxu0 0.0
        %390 = vmatpush1.msra.mxu0 %v359
        %391 = vmatprep.subr.mxu0 0.0
        %392 = vmatpush1.msra.mxu0 %v360
        %393 = vmatprep.subr.mxu0 0.0
        %394 = vmatpush1.msra.mxu0 0.0
        %395 = vmatprep.subr.mxu0 0.0
        %396 = vmatpush1.msra.mxu0 0.0
        %397 = vmatprep.subr.mxu0 0.0
        %398 = vmatpush1.msra.mxu0 0.0
        %399 = vmatprep.subr.mxu0 0.0
        %400 = vmatpush1.msra.mxu0 0.0
        %401 = vmatprep.subr.mxu0 0.0
        %402 = vmatpush1.msra.mxu0 0.0
        %403 = vmatprep.subr.mxu0 0.0
        %404 = vmatpush1.msra.mxu0 0.0
        %405 = vmatprep.subr.mxu0 0.0
        %406 = vmatpush1.msra.mxu0 0.0
        %407 = vmatprep.subr.mxu0 0.0
        %408 = vmatpush1.msra.mxu0 0.0
        %409 = vmatprep.subr.mxu0 0.0
        %410 = vmatpush1.msra.mxu0 0.0
        %411 = vmatprep.subr.mxu0 0.0
        %412 = vmatpush1.msra.mxu0 0.0
        %413 = vmatprep.subr.mxu0 0.0
        %414 = vmatpush1.msra.mxu0 0.0
        %415 = vmatprep.subr.mxu0 0.0
        %416 = vmatpush1.msra.mxu0 0.0
        %417 = vmatprep.subr.mxu0 0.0
        %418 = vmatpush1.msra.mxu0 0.0
        %419 = vmatprep.subr.mxu0 0.0
        %420 = vmatpush1.msra.mxu0 0.0
        %421 = vmatprep.subr.mxu0 0.0
        %422 = vmatpush1.msra.mxu0 0.0
        %423 = vmatprep.subr.mxu0 0.0
        %424 = vmatpush1.msra.mxu0 0.0
        %425 = vmatprep.mubr.f32.mxu0 0.0
        %426 = vmatmul.mubr.f32.gmra.mrb[0].mxu0 %v337
        %v427 = vpop.f32.mrb[0].mxu0
        %v428 = vadd.f32 0.0, %v427
        %v429 = vpop.f32.mrb[0].mxu0
        %430 = vmatprep.mubr.f32.mxu0 0.0
        %431 = vmatmul.mubr.f32.gmra.mrb[0].mxu0 %v334
        %v432 = vpop.f32.mrb[0].mxu0
        %v433 = vadd.f32 0.0, %v432
        %v434 = vpop.f32.mrb[0].mxu0
        %435 = vdwg.mxu0
        %v437 = vlaneseq
        %v438 = vshrl.u32 %v437, 7
        %v439 = vsub.s32 0, %v438
        %v440 = vrot.slane %v328, %v439
        %v442 = vadd.f32 %v440, %v428
        %v443 = vadd.f32 %v440, %v433
        %s444 = scalar_lea.vmem [#allocation5], 128
        %v445 = vld [vmem:[%s444] sm:$0xff]
        %v446 = vld [vmem:[%s444 + $0x8] sm:$0xff]
        %v447 = vld [vmem:[%s444 + $0x10] sm:$0xff]
        %v448 = vld [vmem:[%s444 + $0x18] sm:$0xff]
        %v449 = vld [vmem:[%s444 + $0x20] sm:$0xff]
        %v450 = vld [vmem:[%s444 + $0x28] sm:$0xff]
        %v451 = vld [vmem:[%s444 + $0x30] sm:$0xff]
        %v452 = vld [vmem:[%s444 + $0x38] sm:$0xff]
        %v453 = vld [vmem:[%s444 + $0x40] sm:$0xff]
        %v454 = vld [vmem:[%s444 + $0x48] sm:$0xff]
        %v455 = vld [vmem:[%s444 + $0x50] sm:$0xff]
        %v456 = vld [vmem:[%s444 + $0x58] sm:$0xff]
        %v457 = vld [vmem:[%s444 + $0x60] sm:$0xff]
        %v458 = vld [vmem:[%s444 + $0x68] sm:$0xff]
        %v459 = vld [vmem:[%s444 + $0x70] sm:$0xff]
        %v460 = vld [vmem:[%s444 + $0x78] sm:$0xff]
        %461 = vmatprep.subr.mxu0 0.0
        %462 = vmatpush1.msra.mxu0 %v445
        %463 = vmatprep.subr.mxu0 0.0
        %464 = vmatpush1.msra.mxu0 %v446
        %465 = vmatprep.subr.mxu0 0.0
        %466 = vmatpush1.msra.mxu0 %v447
        %467 = vmatprep.subr.mxu0 0.0
        %468 = vmatpush1.msra.mxu0 %v448
        %469 = vmatprep.subr.mxu0 0.0
        %470 = vmatpush1.msra.mxu0 %v449
        %471 = vmatprep.subr.mxu0 0.0
        %472 = vmatpush1.msra.mxu0 %v450
        %473 = vmatprep.subr.mxu0 0.0
        %474 = vmatpush1.msra.mxu0 %v451
        %475 = vmatprep.subr.mxu0 0.0
        %476 = vmatpush1.msra.mxu0 %v452
        %477 = vmatprep.subr.mxu0 0.0
        %478 = vmatpush1.msra.mxu0 %v453
        %479 = vmatprep.subr.mxu0 0.0
        %480 = vmatpush1.msra.mxu0 %v454
        %481 = vmatprep.subr.mxu0 0.0
        %482 = vmatpush1.msra.mxu0 %v455
        %483 = vmatprep.subr.mxu0 0.0
        %484 = vmatpush1.msra.mxu0 %v456
        %485 = vmatprep.subr.mxu0 0.0
        %486 = vmatpush1.msra.mxu0 %v457
        %487 = vmatprep.subr.mxu0 0.0
        %488 = vmatpush1.msra.mxu0 %v458
        %489 = vmatprep.subr.mxu0 0.0
        %490 = vmatpush1.msra.mxu0 %v459
        %491 = vmatprep.subr.mxu0 0.0
        %492 = vmatpush1.msra.mxu0 %v460
        %493 = vmatprep.subr.mxu0 0.0
        %494 = vmatpush1.msra.mxu0 0.0
        %495 = vmatprep.subr.mxu0 0.0
        %496 = vmatpush1.msra.mxu0 0.0
        %497 = vmatprep.subr.mxu0 0.0
        %498 = vmatpush1.msra.mxu0 0.0
        %499 = vmatprep.subr.mxu0 0.0
        %500 = vmatpush1.msra.mxu0 0.0
        %501 = vmatprep.subr.mxu0 0.0
        %502 = vmatpush1.msra.mxu0 0.0
        %503 = vmatprep.subr.mxu0 0.0
        %504 = vmatpush1.msra.mxu0 0.0
        %505 = vmatprep.subr.mxu0 0.0
        %506 = vmatpush1.msra.mxu0 0.0
        %507 = vmatprep.subr.mxu0 0.0
        %508 = vmatpush1.msra.mxu0 0.0
        %509 = vmatprep.subr.mxu0 0.0
        %510 = vmatpush1.msra.mxu0 0.0
        %511 = vmatprep.subr.mxu0 0.0
        %512 = vmatpush1.msra.mxu0 0.0
        %513 = vmatprep.subr.mxu0 0.0
        %514 = vmatpush1.msra.mxu0 0.0
        %515 = vmatprep.subr.mxu0 0.0
        %516 = vmatpush1.msra.mxu0 0.0
        %517 = vmatprep.subr.mxu0 0.0
        %518 = vmatpush1.msra.mxu0 0.0
        %519 = vmatprep.subr.mxu0 0.0
        %520 = vmatpush1.msra.mxu0 0.0
        %521 = vmatprep.subr.mxu0 0.0
        %522 = vmatpush1.msra.mxu0 0.0
        %523 = vmatprep.subr.mxu0 0.0
        %524 = vmatpush1.msra.mxu0 0.0
        %525 = vmatprep.mubr.f32.mxu0 0.0
        %526 = vmatmul.mubr.f32.gmra.mrb[0].mxu0 %v326
        %v527 = vpop.f32.mrb[0].mxu0
        %v528 = vadd.f32 0.0, %v527
        %v529 = vpop.f32.mrb[0].mxu0
        %530 = vmatprep.mubr.f32.mxu0 0.0
        %531 = vmatmul.mubr.f32.gmra.mrb[0].mxu0 %v327
        %v532 = vpop.f32.mrb[0].mxu0
        %v533 = vadd.f32 0.0, %v532
        %v534 = vpop.f32.mrb[0].mxu0
        %535 = vdwg.mxu0
        %v536 = vadd.f32 %v442, %v528
        %v537 = vadd.f32 %v443, %v533
        %s538 = scalar_lea.vmem [#allocation5], 256
        %v539 = vld [vmem:[%s538] sm:$0xff]
        %v540 = vld [vmem:[%s538 + $0x8] sm:$0xff]
        %v541 = vld [vmem:[%s538 + $0x10] sm:$0xff]
        %v542 = vld [vmem:[%s538 + $0x18] sm:$0xff]
        %v543 = vld [vmem:[%s538 + $0x20] sm:$0xff]
        %v544 = vld [vmem:[%s538 + $0x28] sm:$0xff]
        %v545 = vld [vmem:[%s538 + $0x30] sm:$0xff]
        %v546 = vld [vmem:[%s538 + $0x38] sm:$0xff]
        %v547 = vld [vmem:[%s538 + $0x40] sm:$0xff]
        %v548 = vld [vmem:[%s538 + $0x48] sm:$0xff]
        %v549 = vld [vmem:[%s538 + $0x50] sm:$0xff]
        %v550 = vld [vmem:[%s538 + $0x58] sm:$0xff]
        %v551 = vld [vmem:[%s538 + $0x60] sm:$0xff]
        %v552 = vld [vmem:[%s538 + $0x68] sm:$0xff]
        %v553 = vld [vmem:[%s538 + $0x70] sm:$0xff]
        %v554 = vld [vmem:[%s538 + $0x78] sm:$0xff]
        %555 = vmatprep.subr.mxu0 0.0
        %556 = vmatpush1.msra.mxu0 %v539
        %557 = vmatprep.subr.mxu0 0.0
        %558 = vmatpush1.msra.mxu0 %v540
        %559 = vmatprep.subr.mxu0 0.0
        %560 = vmatpush1.msra.mxu0 %v541
        %561 = vmatprep.subr.mxu0 0.0
        %562 = vmatpush1.msra.mxu0 %v542
        %563 = vmatprep.subr.mxu0 0.0
        %564 = vmatpush1.msra.mxu0 %v543
        %565 = vmatprep.subr.mxu0 0.0
        %566 = vmatpush1.msra.mxu0 %v544
        %567 = vmatprep.subr.mxu0 0.0
        %568 = vmatpush1.msra.mxu0 %v545
        %569 = vmatprep.subr.mxu0 0.0
        %570 = vmatpush1.msra.mxu0 %v546
        %571 = vmatprep.subr.mxu0 0.0
        %572 = vmatpush1.msra.mxu0 %v547
        %573 = vmatprep.subr.mxu0 0.0
        %574 = vmatpush1.msra.mxu0 %v548
        %575 = vmatprep.subr.mxu0 0.0
        %576 = vmatpush1.msra.mxu0 %v549
        %577 = vmatprep.subr.mxu0 0.0
        %578 = vmatpush1.msra.mxu0 %v550
        %579 = vmatprep.subr.mxu0 0.0
        %580 = vmatpush1.msra.mxu0 %v551
        %581 = vmatprep.subr.mxu0 0.0
        %582 = vmatpush1.msra.mxu0 %v552
        %583 = vmatprep.subr.mxu0 0.0
        %584 = vmatpush1.msra.mxu0 %v553
        %585 = vmatprep.subr.mxu0 0.0
        %586 = vmatpush1.msra.mxu0 %v554
        %587 = vmatprep.subr.mxu0 0.0
        %588 = vmatpush1.msra.mxu0 0.0
        %589 = vmatprep.subr.mxu0 0.0
        %590 = vmatpush1.msra.mxu0 0.0
        %591 = vmatprep.subr.mxu0 0.0
        %592 = vmatpush1.msra.mxu0 0.0
        %593 = vmatprep.subr.mxu0 0.0
        %594 = vmatpush1.msra.mxu0 0.0
        %595 = vmatprep.subr.mxu0 0.0
        %596 = vmatpush1.msra.mxu0 0.0
        %597 = vmatprep.subr.mxu0 0.0
        %598 = vmatpush1.msra.mxu0 0.0
        %599 = vmatprep.subr.mxu0 0.0
        %600 = vmatpush1.msra.mxu0 0.0
        %601 = vmatprep.subr.mxu0 0.0
        %602 = vmatpush1.msra.mxu0 0.0
        %603 = vmatprep.subr.mxu0 0.0
        %604 = vmatpush1.msra.mxu0 0.0
        %605 = vmatprep.subr.mxu0 0.0
        %606 = vmatpush1.msra.mxu0 0.0
        %607 = vmatprep.subr.mxu0 0.0
        %608 = vmatpush1.msra.mxu0 0.0
        %609 = vmatprep.subr.mxu0 0.0
        %610 = vmatpush1.msra.mxu0 0.0
        %611 = vmatprep.subr.mxu0 0.0
        %612 = vmatpush1.msra.mxu0 0.0
        %613 = vmatprep.subr.mxu0 0.0
        %614 = vmatpush1.msra.mxu0 0.0
        %615 = vmatprep.subr.mxu0 0.0
        %616 = vmatpush1.msra.mxu0 0.0
        %617 = vmatprep.subr.mxu0 0.0
        %618 = vmatpush1.msra.mxu0 0.0
        %619 = vmatprep.mubr.f32.mxu0 0.0
        %620 = vmatmul.mubr.f32.gmra.mrb[0].mxu0 %v341
        %v621 = vpop.f32.mrb[0].mxu0
        %v622 = vadd.f32 0.0, %v621
        %v623 = vpop.f32.mrb[0].mxu0
        %624 = vmatprep.mubr.f32.mxu0 0.0
        %625 = vmatmul.mubr.f32.gmra.mrb[0].mxu0 %v344
        %v626 = vpop.f32.mrb[0].mxu0
        %v627 = vadd.f32 0.0, %v626
        %v628 = vpop.f32.mrb[0].mxu0
        %629 = vdwg.mxu0
        %v630 = vadd.f32 %v536, %v622
        %v631 = vadd.f32 %v537, %v627
        %vm632 = vcmp.ge.f32.partialorder %v630, 0.0
        %vm633 = vcmp.ge.f32.partialorder %v631, 0.0
        %v634 = vld [vmem:[%s3] sm:$0x1]
        %v636 = vlaneseq
        %v637 = vshrl.u32 %v636, 7
        %v638 = vsub.s32 0, %v637
        %v639 = vrot.slane %v634, %v638
        %v641 = vmul.f32 %v630, %v639
        %v642 = vmul.f32 %v631, %v639
        %v643 = vsel %vm632, %v630, %v641
        %v644 = vsel %vm633, %v631, %v642
        %v645 = vld [vmem:[%s5] sm:$0x1]
        %v647 = vlaneseq
        %v648 = vshrl.u32 %v647, 7
        %v649 = vsub.s32 0, %v648
        %v650 = vrot.slane %v645, %v649
        %v652 = vadd.f32 %v326, %v650
        %v653 = vadd.f32 %v327, %v650
        %v656 = vrot.slane %v643, 7
        %v657 = vrot.slane %v644, 7
        %v658 = vsel %vm331, %v656, %v657
        %v661 = vsel %vm331, 0.0, %v656
        %v662 = vrot.slane %v643, 1
        %v663 = vrot.slane %v644, 1
        %v664 = vsel %vm338, %v662, %v663
        %v667 = vsel %vm338, %v663, 0.0
        %v668 = vld [vmem:[#allocation7] sm:$0xff]
        %v669 = vld [vmem:[#allocation7 + $0x8] sm:$0xff]
        %v670 = vld [vmem:[#allocation7 + $0x10] sm:$0xff]
        %v671 = vld [vmem:[#allocation7 + $0x18] sm:$0xff]
        %v672 = vld [vmem:[#allocation7 + $0x20] sm:$0xff]
        %v673 = vld [vmem:[#allocation7 + $0x28] sm:$0xff]
        %v674 = vld [vmem:[#allocation7 + $0x30] sm:$0xff]
        %v675 = vld [vmem:[#allocation7 + $0x38] sm:$0xff]
        %v676 = vld [vmem:[#allocation7 + $0x40] sm:$0xff]
        %v677 = vld [vmem:[#allocation7 + $0x48] sm:$0xff]
        %v678 = vld [vmem:[#allocation7 + $0x50] sm:$0xff]
        %v679 = vld [vmem:[#allocation7 + $0x58] sm:$0xff]
        %v680 = vld [vmem:[#allocation7 + $0x60] sm:$0xff]
        %v681 = vld [vmem:[#allocation7 + $0x68] sm:$0xff]
        %v682 = vld [vmem:[#allocation7 + $0x70] sm:$0xff]
        %v683 = vld [vmem:[#allocation7 + $0x78] sm:$0xff]
        %684 = vmatprep.subr.mxu0 0.0
        %685 = vmatpush1.msra.mxu0 %v668
        %686 = vmatprep.subr.mxu0 0.0
        %687 = vmatpush1.msra.mxu0 %v669
        %688 = vmatprep.subr.mxu0 0.0
        %689 = vmatpush1.msra.mxu0 %v670
        %690 = vmatprep.subr.mxu0 0.0
        %691 = vmatpush1.msra.mxu0 %v671
        %692 = vmatprep.subr.mxu0 0.0
        %693 = vmatpush1.msra.mxu0 %v672
        %694 = vmatprep.subr.mxu0 0.0
        %695 = vmatpush1.msra.mxu0 %v673
        %696 = vmatprep.subr.mxu0 0.0
        %697 = vmatpush1.msra.mxu0 %v674
        %698 = vmatprep.subr.mxu0 0.0
        %699 = vmatpush1.msra.mxu0 %v675
        %700 = vmatprep.subr.mxu0 0.0
        %701 = vmatpush1.msra.mxu0 %v676
        %702 = vmatprep.subr.mxu0 0.0
        %703 = vmatpush1.msra.mxu0 %v677
        %704 = vmatprep.subr.mxu0 0.0
        %705 = vmatpush1.msra.mxu0 %v678
        %706 = vmatprep.subr.mxu0 0.0
        %707 = vmatpush1.msra.mxu0 %v679
        %708 = vmatprep.subr.mxu0 0.0
        %709 = vmatpush1.msra.mxu0 %v680
        %710 = vmatprep.subr.mxu0 0.0
        %711 = vmatpush1.msra.mxu0 %v681
        %712 = vmatprep.subr.mxu0 0.0
        %713 = vmatpush1.msra.mxu0 %v682
        %714 = vmatprep.subr.mxu0 0.0
        %715 = vmatpush1.msra.mxu0 %v683
        %716 = vmatprep.subr.mxu0 0.0
        %717 = vmatpush1.msra.mxu0 0.0
        %718 = vmatprep.subr.mxu0 0.0
        %719 = vmatpush1.msra.mxu0 0.0
        %720 = vmatprep.subr.mxu0 0.0
        %721 = vmatpush1.msra.mxu0 0.0
        %722 = vmatprep.subr.mxu0 0.0
        %723 = vmatpush1.msra.mxu0 0.0
        %724 = vmatprep.subr.mxu0 0.0
        %725 = vmatpush1.msra.mxu0 0.0
        %726 = vmatprep.subr.mxu0 0.0
        %727 = vmatpush1.msra.mxu0 0.0
        %728 = vmatprep.subr.mxu0 0.0
        %729 = vmatpush1.msra.mxu0 0.0
        %730 = vmatprep.subr.mxu0 0.0
        %731 = vmatpush1.msra.mxu0 0.0
        %732 = vmatprep.subr.mxu0 0.0
        %733 = vmatpush1.msra.mxu0 0.0
        %734 = vmatprep.subr.mxu0 0.0
        %735 = vmatpush1.msra.mxu0 0.0
        %736 = vmatprep.subr.mxu0 0.0
        %737 = vmatpush1.msra.mxu0 0.0
        %738 = vmatprep.subr.mxu0 0.0
        %739 = vmatpush1.msra.mxu0 0.0
        %740 = vmatprep.subr.mxu0 0.0
        %741 = vmatpush1.msra.mxu0 0.0
        %742 = vmatprep.subr.mxu0 0.0
        %743 = vmatpush1.msra.mxu0 0.0
        %744 = vmatprep.subr.mxu0 0.0
        %745 = vmatpush1.msra.mxu0 0.0
        %746 = vmatprep.subr.mxu0 0.0
        %747 = vmatpush1.msra.mxu0 0.0
        %748 = vmatprep.mubr.f32.mxu0 0.0
        %749 = vmatmul.mubr.f32.gmra.mrb[0].mxu0 %v661
        %v750 = vpop.f32.mrb[0].mxu0
        %v751 = vadd.f32 0.0, %v750
        %v752 = vpop.f32.mrb[0].mxu0
        %753 = vmatprep.mubr.f32.mxu0 0.0
        %754 = vmatmul.mubr.f32.gmra.mrb[0].mxu0 %v658
        %v755 = vpop.f32.mrb[0].mxu0
        %v756 = vadd.f32 0.0, %v755
        %v757 = vpop.f32.mrb[0].mxu0
        %758 = vdwg.mxu0
        %v759 = vadd.f32 %v652, %v751
        %v760 = vadd.f32 %v653, %v756
        %s761 = scalar_lea.vmem [#allocation7], 128
        %v762 = vld [vmem:[%s761] sm:$0xff]
        %v763 = vld [vmem:[%s761 + $0x8] sm:$0xff]
        %v764 = vld [vmem:[%s761 + $0x10] sm:$0xff]
        %v765 = vld [vmem:[%s761 + $0x18] sm:$0xff]
        %v766 = vld [vmem:[%s761 + $0x20] sm:$0xff]
        %v767 = vld [vmem:[%s761 + $0x28] sm:$0xff]
        %v768 = vld [vmem:[%s761 + $0x30] sm:$0xff]
        %v769 = vld [vmem:[%s761 + $0x38] sm:$0xff]
        %v770 = vld [vmem:[%s761 + $0x40] sm:$0xff]
        %v771 = vld [vmem:[%s761 + $0x48] sm:$0xff]
        %v772 = vld [vmem:[%s761 + $0x50] sm:$0xff]
        %v773 = vld [vmem:[%s761 + $0x58] sm:$0xff]
        %v774 = vld [vmem:[%s761 + $0x60] sm:$0xff]
        %v775 = vld [vmem:[%s761 + $0x68] sm:$0xff]
        %v776 = vld [vmem:[%s761 + $0x70] sm:$0xff]
        %v777 = vld [vmem:[%s761 + $0x78] sm:$0xff]
        %778 = vmatprep.subr.mxu0 0.0
        %779 = vmatpush1.msra.mxu0 %v762
        %780 = vmatprep.subr.mxu0 0.0
        %781 = vmatpush1.msra.mxu0 %v763
        %782 = vmatprep.subr.mxu0 0.0
        %783 = vmatpush1.msra.mxu0 %v764
        %784 = vmatprep.subr.mxu0 0.0
        %785 = vmatpush1.msra.mxu0 %v765
        %786 = vmatprep.subr.mxu0 0.0
        %787 = vmatpush1.msra.mxu0 %v766
        %788 = vmatprep.subr.mxu0 0.0
        %789 = vmatpush1.msra.mxu0 %v767
        %790 = vmatprep.subr.mxu0 0.0
        %791 = vmatpush1.msra.mxu0 %v768
        %792 = vmatprep.subr.mxu0 0.0
        %793 = vmatpush1.msra.mxu0 %v769
        %794 = vmatprep.subr.mxu0 0.0
        %795 = vmatpush1.msra.mxu0 %v770
        %796 = vmatprep.subr.mxu0 0.0
        %797 = vmatpush1.msra.mxu0 %v771
        %798 = vmatprep.subr.mxu0 0.0
        %799 = vmatpush1.msra.mxu0 %v772
        %800 = vmatprep.subr.mxu0 0.0
        %801 = vmatpush1.msra.mxu0 %v773
        %802 = vmatprep.subr.mxu0 0.0
        %803 = vmatpush1.msra.mxu0 %v774
        %804 = vmatprep.subr.mxu0 0.0
        %805 = vmatpush1.msra.mxu0 %v775
        %806 = vmatprep.subr.mxu0 0.0
        %807 = vmatpush1.msra.mxu0 %v776
        %808 = vmatprep.subr.mxu0 0.0
        %809 = vmatpush1.msra.mxu0 %v777
        %810 = vmatprep.subr.mxu0 0.0
        %811 = vmatpush1.msra.mxu0 0.0
        %812 = vmatprep.subr.mxu0 0.0
        %813 = vmatpush1.msra.mxu0 0.0
        %814 = vmatprep.subr.mxu0 0.0
        %815 = vmatpush1.msra.mxu0 0.0
        %816 = vmatprep.subr.mxu0 0.0
        %817 = vmatpush1.msra.mxu0 0.0
        %818 = vmatprep.subr.mxu0 0.0
        %819 = vmatpush1.msra.mxu0 0.0
        %820 = vmatprep.subr.mxu0 0.0
        %821 = vmatpush1.msra.mxu0 0.0
        %822 = vmatprep.subr.mxu0 0.0
        %823 = vmatpush1.msra.mxu0 0.0
        %824 = vmatprep.subr.mxu0 0.0
        %825 = vmatpush1.msra.mxu0 0.0
        %826 = vmatprep.subr.mxu0 0.0
        %827 = vmatpush1.msra.mxu0 0.0
        %828 = vmatprep.subr.mxu0 0.0
        %829 = vmatpush1.msra.mxu0 0.0
        %830 = vmatprep.subr.mxu0 0.0
        %831 = vmatpush1.msra.mxu0 0.0
        %832 = vmatprep.subr.mxu0 0.0
        %833 = vmatpush1.msra.mxu0 0.0
        %834 = vmatprep.subr.mxu0 0.0
        %835 = vmatpush1.msra.mxu0 0.0
        %836 = vmatprep.subr.mxu0 0.0
        %837 = vmatpush1.msra.mxu0 0.0
        %838 = vmatprep.subr.mxu0 0.0
        %839 = vmatpush1.msra.mxu0 0.0
        %840 = vmatprep.subr.mxu0 0.0
        %841 = vmatpush1.msra.mxu0 0.0
        %842 = vmatprep.mubr.f32.mxu0 0.0
        %843 = vmatmul.mubr.f32.gmra.mrb[0].mxu0 %v643
        %v844 = vpop.f32.mrb[0].mxu0
        %v845 = vadd.f32 0.0, %v844
        %v846 = vpop.f32.mrb[0].mxu0
        %847 = vmatprep.mubr.f32.mxu0 0.0
        %848 = vmatmul.mubr.f32.gmra.mrb[0].mxu0 %v644
        %v849 = vpop.f32.mrb[0].mxu0
        %v850 = vadd.f32 0.0, %v849
        %v851 = vpop.f32.mrb[0].mxu0
        %852 = vdwg.mxu0
        %v853 = vadd.f32 %v759, %v845
        %v854 = vadd.f32 %v760, %v850
        %s855 = scalar_lea.vmem [#allocation7], 256
        %v856 = vld [vmem:[%s855] sm:$0xff]
        %v857 = vld [vmem:[%s855 + $0x8] sm:$0xff]
        %v858 = vld [vmem:[%s855 + $0x10] sm:$0xff]
        %v859 = vld [vmem:[%s855 + $0x18] sm:$0xff]
        %v860 = vld [vmem:[%s855 + $0x20] sm:$0xff]
        %v861 = vld [vmem:[%s855 + $0x28] sm:$0xff]
        %v862 = vld [vmem:[%s855 + $0x30] sm:$0xff]
        %v863 = vld [vmem:[%s855 + $0x38] sm:$0xff]
        %v864 = vld [vmem:[%s855 + $0x40] sm:$0xff]
        %v865 = vld [vmem:[%s855 + $0x48] sm:$0xff]
        %v866 = vld [vmem:[%s855 + $0x50] sm:$0xff]
        %v867 = vld [vmem:[%s855 + $0x58] sm:$0xff]
        %v868 = vld [vmem:[%s855 + $0x60] sm:$0xff]
        %v869 = vld [vmem:[%s855 + $0x68] sm:$0xff]
        %v870 = vld [vmem:[%s855 + $0x70] sm:$0xff]
        %v871 = vld [vmem:[%s855 + $0x78] sm:$0xff]
        %872 = vmatprep.subr.mxu0 0.0
        %873 = vmatpush1.msra.mxu0 %v856
        %874 = vmatprep.subr.mxu0 0.0
        %875 = vmatpush1.msra.mxu0 %v857
        %876 = vmatprep.subr.mxu0 0.0
        %877 = vmatpush1.msra.mxu0 %v858
        %878 = vmatprep.subr.mxu0 0.0
        %879 = vmatpush1.msra.mxu0 %v859
        %880 = vmatprep.subr.mxu0 0.0
        %881 = vmatpush1.msra.mxu0 %v860
        %882 = vmatprep.subr.mxu0 0.0
        %883 = vmatpush1.msra.mxu0 %v861
        %884 = vmatprep.subr.mxu0 0.0
        %885 = vmatpush1.msra.mxu0 %v862
        %886 = vmatprep.subr.mxu0 0.0
        %887 = vmatpush1.msra.mxu0 %v863
        %888 = vmatprep.subr.mxu0 0.0
        %889 = vmatpush1.msra.mxu0 %v864
        %890 = vmatprep.subr.mxu0 0.0
        %891 = vmatpush1.msra.mxu0 %v865
        %892 = vmatprep.subr.mxu0 0.0
        %893 = vmatpush1.msra.mxu0 %v866
        %894 = vmatprep.subr.mxu0 0.0
        %895 = vmatpush1.msra.mxu0 %v867
        %896 = vmatprep.subr.mxu0 0.0
        %897 = vmatpush1.msra.mxu0 %v868
        %898 = vmatprep.subr.mxu0 0.0
        %899 = vmatpush1.msra.mxu0 %v869
        %900 = vmatprep.subr.mxu0 0.0
        %901 = vmatpush1.msra.mxu0 %v870
        %902 = vmatprep.subr.mxu0 0.0
        %903 = vmatpush1.msra.mxu0 %v871
        %904 = vmatprep.subr.mxu0 0.0
        %905 = vmatpush1.msra.mxu0 0.0
        %906 = vmatprep.subr.mxu0 0.0
        %907 = vmatpush1.msra.mxu0 0.0
        %908 = vmatprep.subr.mxu0 0.0
        %909 = vmatpush1.msra.mxu0 0.0
        %910 = vmatprep.subr.mxu0 0.0
        %911 = vmatpush1.msra.mxu0 0.0
        %912 = vmatprep.subr.mxu0 0.0
        %913 = vmatpush1.msra.mxu0 0.0
        %914 = vmatprep.subr.mxu0 0.0
        %915 = vmatpush1.msra.mxu0 0.0
        %916 = vmatprep.subr.mxu0 0.0
        %917 = vmatpush1.msra.mxu0 0.0
        %918 = vmatprep.subr.mxu0 0.0
        %919 = vmatpush1.msra.mxu0 0.0
        %920 = vmatprep.subr.mxu0 0.0
        %921 = vmatpush1.msra.mxu0 0.0
        %922 = vmatprep.subr.mxu0 0.0
        %923 = vmatpush1.msra.mxu0 0.0
        %924 = vmatprep.subr.mxu0 0.0
        %925 = vmatpush1.msra.mxu0 0.0
        %926 = vmatprep.subr.mxu0 0.0
        %927 = vmatpush1.msra.mxu0 0.0
        %928 = vmatprep.subr.mxu0 0.0
        %929 = vmatpush1.msra.mxu0 0.0
        %930 = vmatprep.subr.mxu0 0.0
        %931 = vmatpush1.msra.mxu0 0.0
        %932 = vmatprep.subr.mxu0 0.0
        %933 = vmatpush1.msra.mxu0 0.0
        %934 = vmatprep.subr.mxu0 0.0
        %935 = vmatpush1.msra.mxu0 0.0
        %936 = vmatprep.mubr.f32.mxu0 0.0
        %937 = vmatmul.mubr.f32.gmra.mrb[0].mxu0 %v664
        %v938 = vpop.f32.mrb[0].mxu0
        %v939 = vadd.f32 0.0, %v938
        %v940 = vpop.f32.mrb[0].mxu0
        %941 = vmatprep.mubr.f32.mxu0 0.0
        %942 = vmatmul.mubr.f32.gmra.mrb[0].mxu0 %v667
        %v943 = vpop.f32.mrb[0].mxu0
        %v944 = vadd.f32 0.0, %v943
        %v945 = vpop.f32.mrb[0].mxu0
        %946 = vdwg.mxu0
        %v947 = vadd.f32 %v853, %v939
        %v948 = vadd.f32 %v854, %v944
        %vm949 = vcmp.ge.f32.partialorder %v947, 0.0
        %vm950 = vcmp.ge.f32.partialorder %v948, 0.0
        %v951 = vld [vmem:[%s6] sm:$0x1]
        %v953 = vlaneseq
        %v954 = vshrl.u32 %v953, 7
        %v955 = vsub.s32 0, %v954
        %v956 = vrot.slane %v951, %v955
        %v958 = vmul.f32 %v947, %v956
        %v959 = vmul.f32 %v948, %v956
        %v960 = vsel %vm949, %v947, %v958
        %v961 = vsel %vm950, %v948, %v959
        %962 = vst [vmem:[%s325] sm:$0xff] %v960
        %963 = vst [vmem:[%s325 + $0x8] sm:$0xff] %v961
        %s964 = sand.u32 %s185, 1
        %s965 = scalar_lea.sflag [#allocation4], %s964
        %s966 = sand.u32 %s185, 1
        %s967 = smul.addr %s966, 16
        %s968 = scalar_lea.vmem [#allocation8], %s967
        // Predicated region
        $region61: #{tpu_custom_call.1} parent=47 // pred_check
          %p969 = pneg %p195
        $region62: #{tpu_custom_call.1} parent=47 // pred_check_branch
          %971 = sbr.rel (%p969) target = $region64
        $region63: #{tpu_custom_call.1} parent=47 // pred_region
          %s973 = ssub.s32 256, 256
          %974 = vsyncadd %s965, %s973
          %s975 = smul.addr %s25, 2
          %s976 = smul.addr %s975, 128
          %s977 = scalar_lea.hbm %s7, %s976
          %s978 = sshll.u32 %s968, 4
          %s979 = int_to_ptr.vmem [resolvable:$true] %s978
          %984 = dma.vmem_to_hbm [thread:$0]  %s979, 256, %s977, %s965, 128, 128, 8
        $region64: #{tpu_custom_call.1} parent=47 // pred_fallthru
          _
      $region48: #{tpu_custom_call.1} parent=5 // pred_fallthru
        _
      %p985 = scmp.le.s32.totalorder 2, %s20
      // Predicated region
      $region65: #{tpu_custom_call.1} parent=5 // pred_check
        %p986 = pneg %p985
      $region66: #{tpu_custom_call.1} parent=5 // pred_check_branch
        %988 = sbr.rel (%p986) target = $region68
      $region67: #{tpu_custom_call.1} parent=5 // pred_region
        %s989 = ssub.s32 %s20, 2
        // Predicated region
        $region69: #{tpu_custom_call.1} parent=67 // pred_check
          %p990 = pneg %p201
        $region70: #{tpu_custom_call.1} parent=67 // pred_check_branch
          %992 = sbr.rel (%p990) target = $region72
        $region71: #{tpu_custom_call.1} parent=67 // pred_region
          %s993 = sand.u32 %s186, 1
          %s994 = scalar_lea.sflag [#allocation4], %s993
          %s995 = sand.u32 %s186, 1
          %s996 = smul.addr %s995, 16
          %s997 = scalar_lea.vmem [#allocation8], %s996
          %998 = dma.done %s994, 256
        $region72: #{tpu_custom_call.1} parent=67 // pred_fallthru
          _
      $region68: #{tpu_custom_call.1} parent=5 // pred_fallthru
        _
    $region6: #{tpu_custom_call.1} parent=1 // loop_footer
      %s24 = sadd.s32 1, %s20
    $region7: #{tpu_custom_call.1} parent=1 // loop_footer_branch
      %19 = sbr.rel target = $region3
    $region8: #{tpu_custom_call.1} parent=1 // loop_exit
      _
    %999 = vsyncpa [#allocation3], 1
    %s1000 = scalar_lea.sflag [#allocation3], 1
    %1001 = vsyncpa %s1000, 1
    %1002 = vsyncpa [#allocation6], 1
    %1003 = vsyncpa [#allocation4], 1
    %s1004 = scalar_lea.sflag [#allocation4], 1
    %1005 = vsyncpa %s1004, 1

</llo_original>
